<compile_context>
chip_gen: v6e
topology: v6e:2x2x1
jax: 0.10.0
libtpu: 0.0.40
codegen_flags: <defaults>
</compile_context>

<pallas_src>
import functools

import jax
import jax.numpy as jnp
from jax.experimental import pallas as pl
from jax.experimental.pallas import tpu as pltpu


# ----------------------------------------------------------------------------
# Fused whole-network kernel: o = L_{n-1}(...L_1(L_0(x))...)
# Each layer: y = act(x @ W + b), with W already (in, out), zero-padded.
# ----------------------------------------------------------------------------
def _fused_mlp_kernel(x_ref, *refs, layer_dims, activations):
    """x_ref:  (TM, Kpad0) activation tile
    refs:      (w0, b0, w1, b1, ..., w_{L-1}, b_{L-1}, o_ref)
               w_i: (Kpad_i, Npad_i) pre-transposed, zero-padded
               b_i: (1, Npad_i)      zero-padded
    o_ref:     (TM, Npad_{L-1})
    """
    n_layers = len(layer_dims)
    w_refs = refs[0:2 * n_layers:2]
    b_refs = refs[1:2 * n_layers:2]
    o_ref = refs[2 * n_layers]

    # Static Python loop over layers: activations stay in vregs; the padded
    # lanes carry exact zeros through relu/tanh so no masking is needed.
    h = x_ref[...]
    for i in range(n_layers):
        y = jnp.dot(h, w_refs[i][...], preferred_element_type=jnp.float32)
        y = y + b_refs[i][...]
        act = activations[i]
        if act == "relu":
            y = jnp.maximum(y, 0.0)
        elif act == "tanh":
            y = jnp.tanh(y)
        h = y

    o_ref[...] = h.astype(o_ref.dtype)


# ----------------------------------------------------------------------------
# Parameter prep: pre-transpose + zero-pad to lane-dense shapes (done once).
# ----------------------------------------------------------------------------
def _round_up(x, m):
    return (x + m - 1) // m * m


def prepare_params(params):
    """params: list of (w (out,in), b (out,), act) in PyTorch nn.Linear layout.
    Returns flat list [w0_p, b0_p, w1_p, b1_p, ...] with w_p (Kpad, Npad),
    b_p (1, Npad), plus static dims/activation metadata."""
    flat = []
    dims = []
    acts = []
    for w, b, act in params:
        out_f, in_f = w.shape
        kpad = _round_up(in_f, 128)
        npad = _round_up(out_f, 128)
        w_p = jnp.zeros((kpad, npad), jnp.float32).at[:in_f, :out_f].set(
            w.T.astype(jnp.float32))
        b_p = jnp.zeros((1, npad), jnp.float32).at[0, :out_f].set(
            b.astype(jnp.float32))
        flat += [w_p, b_p]
        dims.append((kpad, npad))
        acts.append(act)
    # Chain consistency: padded out width of layer i == padded in width of i+1.
    for i in range(len(dims) - 1):
        assert dims[i][1] == dims[i + 1][0], (dims[i], dims[i + 1])
    return flat, tuple(dims), tuple(acts)


# ----------------------------------------------------------------------------
# Fused forward pass (single pallas_call)
# ----------------------------------------------------------------------------
def autoencoder_forward(params, x):
    flat, dims, acts = prepare_params(params)

    M, D = x.shape
    kpad0 = dims[0][0]
    npad_out = dims[-1][1]
    out_true = params[-1][0].shape[0]

    # Batch tiling: lane-dense features, sublane-aligned rows, parallel grid
    # over row tiles (engages the 2nd TensorCore on v7x when M is large).
    TM = 128 if M >= 128 else _round_up(M, 8)
    Mpad = _round_up(M, TM)
    x_p = jnp.zeros((Mpad, kpad0), jnp.float32).at[:M, :D].set(
        x.astype(jnp.float32))

    kernel = functools.partial(
        _fused_mlp_kernel, layer_dims=dims, activations=acts)

    in_specs = [pl.BlockSpec((TM, kpad0), lambda i: (i, 0))]
    for (kpad, npad) in dims:
        in_specs.append(pl.BlockSpec((kpad, npad), lambda i: (0, 0)))
        in_specs.append(pl.BlockSpec((1, npad), lambda i: (0, 0)))

    out_p = pl.pallas_call(
        kernel,
        out_shape=jax.ShapeDtypeStruct((Mpad, npad_out), x.dtype),
        grid=(Mpad // TM,),
        in_specs=in_specs,
        out_specs=pl.BlockSpec((TM, npad_out), lambda i: (i, 0)),
        compiler_params=pltpu.CompilerParams(
            dimension_semantics=("parallel",),
            vmem_limit_bytes=64 * 1024 * 1024,
        ),
    )(x_p, *flat)

    return out_p[:M, :out_true]


# ----------------------------------------------------------------------------
# Parameter construction (mirrors nn.Linear default init + module structure)
# ----------------------------------------------------------------------------
def init_autoencoder_params(key, layers_sizes, dtype=jnp.float32):
    """Deterministic init mimicking nn.Linear: U(-1/sqrt(fan_in), 1/sqrt(fan_in))."""

    def make_linear(key, in_f, out_f):
        kw, kb = jax.random.split(key)
        bound = 1.0 / jnp.sqrt(jnp.asarray(in_f, dtype))
        w = jax.random.uniform(kw, (out_f, in_f), dtype, -bound, bound)
        b = jax.random.uniform(kb, (out_f,), dtype, -bound, bound)
        return w, b

    # encoder: layers_sizes[i] -> layers_sizes[i+1], ReLU between (not after last)
    n_enc = len(layers_sizes) - 1
    rev = layers_sizes[::-1]
    n_dec = len(rev) - 1
    keys = jax.random.split(key, n_enc + n_dec)

    layers = []
    for i in range(n_enc):
        w, b = make_linear(keys[i], layers_sizes[i], layers_sizes[i + 1])
        act = "relu" if i < n_enc - 1 else "none"
        layers.append((w, b, act))

    # decoder: reversed sizes, ReLU between, Tanh fused into the final linear
    for i in range(n_dec):
        w, b = make_linear(keys[n_enc + i], rev[i], rev[i + 1])
        act = "relu" if i < n_dec - 1 else "tanh"
        layers.append((w, b, act))

    return layers


# ----------------------------------------------------------------------------
# Pure-JAX reference (sanity check of the fused kernel)
# ----------------------------------------------------------------------------
def autoencoder_reference(params, x):
    for w, b, act in params:
        x = x @ w.T + b
        if act == "relu":
            x = jnp.maximum(x, 0.0)
        elif act == "tanh":
            x = jnp.tanh(x)
    return x


if __name__ == "__main__":
    # MLP on flattened features: encoder 64->32->8, decoder 8->32->64 (+Tanh)
    layers_sizes = [64, 32, 8]
    batch = 8

    key = jax.random.PRNGKey(0)
    k_params, k_x = jax.random.split(key)

    params = init_autoencoder_params(k_params, layers_sizes)
    x = jax.random.normal(k_x, (batch, layers_sizes[0]), jnp.float32)

    out = autoencoder_forward(params, x)
    out = jax.block_until_ready(out)

    ref = autoencoder_reference(params, x)
    assert out.shape == (batch, layers_sizes[0]), out.shape
    assert jnp.allclose(out, ref, atol=1e-5, rtol=1e-5), "mismatch vs reference"

    print("KERNEL_OK")
</pallas_src>

<mosaic_0001>
module attributes {stable_mosaic.version = 11 : i64} {
  func.func @_fused_mlp_kernel(%arg0: i32, %arg1: memref<8x128xf32, #tpu.memory_space<vmem>>, %arg2: memref<128x128xf32, #tpu.memory_space<vmem>>, %arg3: memref<1x128xf32, #tpu.memory_space<vmem>>, %arg4: memref<128x128xf32, #tpu.memory_space<vmem>>, %arg5: memref<1x128xf32, #tpu.memory_space<vmem>>, %arg6: memref<128x128xf32, #tpu.memory_space<vmem>>, %arg7: memref<1x128xf32, #tpu.memory_space<vmem>>, %arg8: memref<128x128xf32, #tpu.memory_space<vmem>>, %arg9: memref<1x128xf32, #tpu.memory_space<vmem>>, %arg10: memref<8x128xf32, #tpu.memory_space<vmem>>) attributes {dimension_semantics = [#tpu.dimension_semantics<parallel>], iteration_bounds = array<i64: 1>, scalar_prefetch = 0 : i64, scratch_operands = 0 : i64, tpu.core_type = #tpu.core_type<tc>, window_params = [{transform_indices = @transform_0, window_bounds = array<i64: 8, 128>}, {pipeline_mode = #tpu.pipeline_mode<synchronous>, transform_indices = @transform_1, window_bounds = array<i64: 128, 128>}, {pipeline_mode = #tpu.pipeline_mode<synchronous>, transform_indices = @transform_2, window_bounds = array<i64: 1, 128>}, {pipeline_mode = #tpu.pipeline_mode<synchronous>, transform_indices = @transform_3, window_bounds = array<i64: 128, 128>}, {pipeline_mode = #tpu.pipeline_mode<synchronous>, transform_indices = @transform_4, window_bounds = array<i64: 1, 128>}, {pipeline_mode = #tpu.pipeline_mode<synchronous>, transform_indices = @transform_5, window_bounds = array<i64: 128, 128>}, {pipeline_mode = #tpu.pipeline_mode<synchronous>, transform_indices = @transform_6, window_bounds = array<i64: 1, 128>}, {pipeline_mode = #tpu.pipeline_mode<synchronous>, transform_indices = @transform_7, window_bounds = array<i64: 128, 128>}, {pipeline_mode = #tpu.pipeline_mode<synchronous>, transform_indices = @transform_8, window_bounds = array<i64: 1, 128>}, {transform_indices = @transform_9, window_bounds = array<i64: 8, 128>}]} {
    %c0 = arith.constant 0 : index
    %c0_0 = arith.constant 0 : index
    %0 = vector.load %arg1[%c0, %c0_0] : memref<8x128xf32, #tpu.memory_space<vmem>>, vector<8x128xf32>
    %c0_1 = arith.constant 0 : index
    %c0_2 = arith.constant 0 : index
    %1 = vector.load %arg2[%c0_1, %c0_2] : memref<128x128xf32, #tpu.memory_space<vmem>>, vector<128x128xf32>
    %cst = arith.constant dense<0.000000e+00> : vector<8x128xf32>
    %2 = tpu.matmul %0, %1, %cst {dimension_numbers = #tpu.dot_dimension_numbers<[1], [0], [0], [1], [0, 0, 1, 1], [], []>} : vector<8x128xf32>, vector<128x128xf32>, vector<8x128xf32> -> vector<8x128xf32>
    %c0_3 = arith.constant 0 : index
    %c0_4 = arith.constant 0 : index
    %3 = vector.load %arg3[%c0_3, %c0_4] : memref<1x128xf32, #tpu.memory_space<vmem>>, vector<1x128xf32>
    %4 = vector.broadcast %3 : vector<1x128xf32> to vector<8x128xf32>
    %5 = arith.addf %2, %4 : vector<8x128xf32>
    %cst_5 = arith.constant 0.000000e+00 : f32
    %6 = vector.broadcast %cst_5 : f32 to vector<8x128xf32>
    %7 = arith.maximumf %5, %6 : vector<8x128xf32>
    %c0_6 = arith.constant 0 : index
    %c0_7 = arith.constant 0 : index
    %8 = vector.load %arg4[%c0_6, %c0_7] : memref<128x128xf32, #tpu.memory_space<vmem>>, vector<128x128xf32>
    %cst_8 = arith.constant dense<0.000000e+00> : vector<8x128xf32>
    %9 = tpu.matmul %7, %8, %cst_8 {dimension_numbers = #tpu.dot_dimension_numbers<[1], [0], [0], [1], [0, 0, 1, 1], [], []>} : vector<8x128xf32>, vector<128x128xf32>, vector<8x128xf32> -> vector<8x128xf32>
    %c0_9 = arith.constant 0 : index
    %c0_10 = arith.constant 0 : index
    %10 = vector.load %arg5[%c0_9, %c0_10] : memref<1x128xf32, #tpu.memory_space<vmem>>, vector<1x128xf32>
    %11 = vector.broadcast %10 : vector<1x128xf32> to vector<8x128xf32>
    %12 = arith.addf %9, %11 : vector<8x128xf32>
    %c0_11 = arith.constant 0 : index
    %c0_12 = arith.constant 0 : index
    %13 = vector.load %arg6[%c0_11, %c0_12] : memref<128x128xf32, #tpu.memory_space<vmem>>, vector<128x128xf32>
    %cst_13 = arith.constant dense<0.000000e+00> : vector<8x128xf32>
    %14 = tpu.matmul %12, %13, %cst_13 {dimension_numbers = #tpu.dot_dimension_numbers<[1], [0], [0], [1], [0, 0, 1, 1], [], []>} : vector<8x128xf32>, vector<128x128xf32>, vector<8x128xf32> -> vector<8x128xf32>
    %c0_14 = arith.constant 0 : index
    %c0_15 = arith.constant 0 : index
    %15 = vector.load %arg7[%c0_14, %c0_15] : memref<1x128xf32, #tpu.memory_space<vmem>>, vector<1x128xf32>
    %16 = vector.broadcast %15 : vector<1x128xf32> to vector<8x128xf32>
    %17 = arith.addf %14, %16 : vector<8x128xf32>
    %cst_16 = arith.constant 0.000000e+00 : f32
    %18 = vector.broadcast %cst_16 : f32 to vector<8x128xf32>
    %19 = arith.maximumf %17, %18 : vector<8x128xf32>
    %c0_17 = arith.constant 0 : index
    %c0_18 = arith.constant 0 : index
    %20 = vector.load %arg8[%c0_17, %c0_18] : memref<128x128xf32, #tpu.memory_space<vmem>>, vector<128x128xf32>
    %cst_19 = arith.constant dense<0.000000e+00> : vector<8x128xf32>
    %21 = tpu.matmul %19, %20, %cst_19 {dimension_numbers = #tpu.dot_dimension_numbers<[1], [0], [0], [1], [0, 0, 1, 1], [], []>} : vector<8x128xf32>, vector<128x128xf32>, vector<8x128xf32> -> vector<8x128xf32>
    %c0_20 = arith.constant 0 : index
    %c0_21 = arith.constant 0 : index
    %22 = vector.load %arg9[%c0_20, %c0_21] : memref<1x128xf32, #tpu.memory_space<vmem>>, vector<1x128xf32>
    %23 = vector.broadcast %22 : vector<1x128xf32> to vector<8x128xf32>
    %24 = arith.addf %21, %23 : vector<8x128xf32>
    %25 = math.tanh %24 : vector<8x128xf32>
    %c0_22 = arith.constant 0 : index
    %c0_23 = arith.constant 0 : index
    %26 = vector.load %arg10[%c0_22, %c0_23] : memref<8x128xf32, #tpu.memory_space<vmem>>, vector<8x128xf32>
    tpu.vector_store %arg10[%c0_22, %c0_23], %25 {strides = array<i32>} : memref<8x128xf32, #tpu.memory_space<vmem>>, vector<8x128xf32>,
    return
  }
  func.func @transform_0(%arg0: i32) -> (i32, i32) {
    %c0_i32 = arith.constant 0 : i32
    %c0_i32_0 = arith.constant 0 : i32
    return %arg0, %c0_i32 : i32, i32
  }
  func.func @transform_1(%arg0: i32) -> (i32, i32) {
    %c0_i32 = arith.constant 0 : i32
    %c0_i32_0 = arith.constant 0 : i32
    %c0_i32_1 = arith.constant 0 : i32
    return %c0_i32, %c0_i32_0 : i32, i32
  }
  func.func @transform_2(%arg0: i32) -> (i32, i32) {
    %c0_i32 = arith.constant 0 : i32
    %c0_i32_0 = arith.constant 0 : i32
    %c0_i32_1 = arith.constant 0 : i32
    return %c0_i32, %c0_i32_0 : i32, i32
  }
  func.func @transform_3(%arg0: i32) -> (i32, i32) {
    %c0_i32 = arith.constant 0 : i32
    %c0_i32_0 = arith.constant 0 : i32
    %c0_i32_1 = arith.constant 0 : i32
    return %c0_i32, %c0_i32_0 : i32, i32
  }
  func.func @transform_4(%arg0: i32) -> (i32, i32) {
    %c0_i32 = arith.constant 0 : i32
    %c0_i32_0 = arith.constant 0 : i32
    %c0_i32_1 = arith.constant 0 : i32
    return %c0_i32, %c0_i32_0 : i32, i32
  }
  func.func @transform_5(%arg0: i32) -> (i32, i32) {
    %c0_i32 = arith.constant 0 : i32
    %c0_i32_0 = arith.constant 0 : i32
    %c0_i32_1 = arith.constant 0 : i32
    return %c0_i32, %c0_i32_0 : i32, i32
  }
  func.func @transform_6(%arg0: i32) -> (i32, i32) {
    %c0_i32 = arith.constant 0 : i32
    %c0_i32_0 = arith.constant 0 : i32
    %c0_i32_1 = arith.constant 0 : i32
    return %c0_i32, %c0_i32_0 : i32, i32
  }
  func.func @transform_7(%arg0: i32) -> (i32, i32) {
    %c0_i32 = arith.constant 0 : i32
    %c0_i32_0 = arith.constant 0 : i32
    %c0_i32_1 = arith.constant 0 : i32
    return %c0_i32, %c0_i32_0 : i32, i32
  }
  func.func @transform_8(%arg0: i32) -> (i32, i32) {
    %c0_i32 = arith.constant 0 : i32
    %c0_i32_0 = arith.constant 0 : i32
    %c0_i32_1 = arith.constant 0 : i32
    return %c0_i32, %c0_i32_0 : i32, i32
  }
  func.func @transform_9(%arg0: i32) -> (i32, i32) {
    %c0_i32 = arith.constant 0 : i32
    %c0_i32_0 = arith.constant 0 : i32
    return %arg0, %c0_i32 : i32, i32
  }
}

</mosaic_0001>

<llo_original>
// kernel: tpu_custom_call.1
$region0: #{tpu_custom_call.1}
  #allocation0 [shape = 'u32[]', space=smem, size = 0x4, offset = 0x4, fixed_abs, tag = 'smem constant byte address 0x4 - core index']
  #allocation1 [shape = 'u32[144,128]{1,0:T(1,128)}', space=vmem, size = 0x12000, scoped, tag = 'internal scratch']
  %s0 = inlined_call_operand.hbm [shape: f32[8,128], index: 0, kind: input, shape index: {}]
  %s1 = inlined_call_operand.hbm [shape: f32[128,128], index: 1, kind: input, shape index: {}]
  %s2 = inlined_call_operand.vmem [shape: f32[1,128], index: 2, kind: input, shape index: {}]
  %s3 = inlined_call_operand.hbm [shape: f32[128,128], index: 3, kind: input, shape index: {}]
  %s4 = inlined_call_operand.vmem [shape: f32[1,128], index: 4, kind: input, shape index: {}]
  %s5 = inlined_call_operand.hbm [shape: f32[128,128], index: 5, kind: input, shape index: {}]
  %s6 = inlined_call_operand.vmem [shape: f32[1,128], index: 6, kind: input, shape index: {}]
  %s7 = inlined_call_operand.hbm [shape: f32[128,128], index: 7, kind: input, shape index: {}]
  %s8 = inlined_call_operand.vmem [shape: f32[1,128], index: 8, kind: input, shape index: {}]
  %s9 = inlined_call_operand.hbm [shape: f32[8,128], index: 9, kind: output, shape index: {}]
  %s10 = sld [smem:[#allocation0]]
  $region66: #{tpu_custom_call.1} parent=0
    _
  %s12 = ssub.s32 1, %s10
  %s13 = scalar_select 0, %s12, %s10
  $region1: #{tpu_custom_call.1} parent=0
    #allocation2 [shape = 'u8[4096]{0}', space=vmem, size = 0x1000, scoped, tag = 'input window, operand 0, single buffered']
    #allocation3 [shape = 's32[1]{0}', space=sflag, size = 0x4, scoped, tag = 'scoped memory for tpu_custom_call.1']
    #allocation4 [shape = 's32[1]{0}', space=sflag, size = 0x4, scoped, tag = 'scoped memory for tpu_custom_call.1']
    #allocation5 [shape = 'u8[65536]{0}', space=vmem, size = 0x10000, scoped, tag = 'input window, operand 1, single buffered']
    #allocation6 [shape = 's32[1]{0}', space=sflag, size = 0x4, scoped, tag = 'scoped memory for tpu_custom_call.1']
    #allocation7 [shape = 'u8[65536]{0}', space=vmem, size = 0x10000, scoped, tag = 'input window, operand 3, single buffered']
    #allocation8 [shape = 'u8[65536]{0}', space=vmem, size = 0x10000, scoped, tag = 'input window, operand 5, single buffered']
    #allocation9 [shape = 's32[1]{0}', space=sflag, size = 0x4, scoped, tag = 'scoped memory for tpu_custom_call.1']
    #allocation10 [shape = 'u8[65536]{0}', space=vmem, size = 0x10000, scoped, tag = 'input window, operand 7, single buffered']
    #allocation11 [shape = 'u8[4096]{0}', space=vmem, size = 0x1000, scoped, tag = 'output window, operand 0, single buffered']
    %14 = vsyncpa [#allocation3], 0
    %15 = vsyncpa [#allocation6], 0
    %16 = vsyncpa [#allocation9], 0
    %17 = vsyncpa [#allocation4], 0
    // Predicated region
    $region2: #{tpu_custom_call.1} parent=1 // pred_check
      _
    $region3: #{tpu_custom_call.1} parent=1 // pred_check_branch
      %19 = sbr.rel (0) target = $region5
    $region4: #{tpu_custom_call.1} parent=1 // pred_region
      %s21 = ssub.s32 128, 128
      %22 = vsyncadd [#allocation3], %s21
      %s24 = sshll.u32 [#allocation2], 4
      %s25 = int_to_ptr.vmem [resolvable:$true] %s24
      %27 = dma.hbm_to_vmem [thread:$0]  %s0, 128, %s25, [#allocation3]
    $region5: #{tpu_custom_call.1} parent=1 // pred_fallthru
      _
    // Predicated region
    $region6: #{tpu_custom_call.1} parent=1 // pred_check
      _
    $region7: #{tpu_custom_call.1} parent=1 // pred_check_branch
      %29 = sbr.rel (0) target = $region9
    $region8: #{tpu_custom_call.1} parent=1 // pred_region
      %s31 = ssub.s32 2048, 2048
      %32 = vsyncadd [#allocation6], %s31
      %s33 = sshll.u32 [#allocation5], 4
      %s34 = int_to_ptr.vmem [resolvable:$true] %s33
      %39 = dma.hbm_to_vmem [thread:$0]  %s1, 2048, %s34, [#allocation6], 128, 128, 8
    $region9: #{tpu_custom_call.1} parent=1 // pred_fallthru
      _
    // Predicated region
    $region10: #{tpu_custom_call.1} parent=1 // pred_check
      _
    $region11: #{tpu_custom_call.1} parent=1 // pred_check_branch
      %41 = sbr.rel (0) target = $region13
    $region12: #{tpu_custom_call.1} parent=1 // pred_region
      _
    $region13: #{tpu_custom_call.1} parent=1 // pred_fallthru
      _
    // Predicated region
    $region14: #{tpu_custom_call.1} parent=1 // pred_check
      _
    $region15: #{tpu_custom_call.1} parent=1 // pred_check_branch
      %43 = sbr.rel (0) target = $region17
    $region16: #{tpu_custom_call.1} parent=1 // pred_region
      %s45 = ssub.s32 2048, 2048
      %46 = vsyncadd [#allocation6], %s45
      %s47 = sshll.u32 [#allocation7], 4
      %s48 = int_to_ptr.vmem [resolvable:$true] %s47
      %53 = dma.hbm_to_vmem [thread:$0]  %s3, 2048, %s48, [#allocation6], 128, 128, 8
    $region17: #{tpu_custom_call.1} parent=1 // pred_fallthru
      _
    // Predicated region
    $region18: #{tpu_custom_call.1} parent=1 // pred_check
      _
    $region19: #{tpu_custom_call.1} parent=1 // pred_check_branch
      %55 = sbr.rel (0) target = $region21
    $region20: #{tpu_custom_call.1} parent=1 // pred_region
      _
    $region21: #{tpu_custom_call.1} parent=1 // pred_fallthru
      _
    // Predicated region
    $region22: #{tpu_custom_call.1} parent=1 // pred_check
      _
    $region23: #{tpu_custom_call.1} parent=1 // pred_check_branch
      %57 = sbr.rel (0) target = $region25
    $region24: #{tpu_custom_call.1} parent=1 // pred_region
      %s59 = ssub.s32 2048, 2048
      %60 = vsyncadd [#allocation9], %s59
      %s61 = sshll.u32 [#allocation8], 4
      %s62 = int_to_ptr.vmem [resolvable:$true] %s61
      %67 = dma.hbm_to_vmem [thread:$0]  %s5, 2048, %s62, [#allocation9], 128, 128, 8
    $region25: #{tpu_custom_call.1} parent=1 // pred_fallthru
      _
    // Predicated region
    $region26: #{tpu_custom_call.1} parent=1 // pred_check
      _
    $region27: #{tpu_custom_call.1} parent=1 // pred_check_branch
      %69 = sbr.rel (0) target = $region29
    $region28: #{tpu_custom_call.1} parent=1 // pred_region
      _
    $region29: #{tpu_custom_call.1} parent=1 // pred_fallthru
      _
    // Predicated region
    $region30: #{tpu_custom_call.1} parent=1 // pred_check
      _
    $region31: #{tpu_custom_call.1} parent=1 // pred_check_branch
      %71 = sbr.rel (0) target = $region33
    $region32: #{tpu_custom_call.1} parent=1 // pred_region
      %s73 = ssub.s32 2048, 2048
      %74 = vsyncadd [#allocation9], %s73
      %s75 = sshll.u32 [#allocation10], 4
      %s76 = int_to_ptr.vmem [resolvable:$true] %s75
      %81 = dma.hbm_to_vmem [thread:$0]  %s7, 2048, %s76, [#allocation9], 128, 128, 8
    $region33: #{tpu_custom_call.1} parent=1 // pred_fallthru
      _
    // Predicated region
    $region34: #{tpu_custom_call.1} parent=1 // pred_check
      _
    $region35: #{tpu_custom_call.1} parent=1 // pred_check_branch
      %83 = sbr.rel (0) target = $region37
    $region36: #{tpu_custom_call.1} parent=1 // pred_region
      _
    $region37: #{tpu_custom_call.1} parent=1 // pred_fallthru
      _
    // Predicated region
    $region38: #{tpu_custom_call.1} parent=1 // pred_check
      _
    $region39: #{tpu_custom_call.1} parent=1 // pred_check_branch
      %85 = sbr.rel (0) target = $region41
    $region40: #{tpu_custom_call.1} parent=1 // pred_region
      %86 = dma.done [#allocation3], 128
    $region41: #{tpu_custom_call.1} parent=1 // pred_fallthru
      _
    // Predicated region
    $region42: #{tpu_custom_call.1} parent=1 // pred_check
      _
    $region43: #{tpu_custom_call.1} parent=1 // pred_check_branch
      %88 = sbr.rel (0) target = $region45
    $region44: #{tpu_custom_call.1} parent=1 // pred_region
      %89 = dma.done [#allocation6], 2048
    $region45: #{tpu_custom_call.1} parent=1 // pred_fallthru
      _
    // Predicated region
    $region46: #{tpu_custom_call.1} parent=1 // pred_check
      _
    $region47: #{tpu_custom_call.1} parent=1 // pred_check_branch
      %91 = sbr.rel (0) target = $region49
    $region48: #{tpu_custom_call.1} parent=1 // pred_region
      %92 = dma.done [#allocation6], 2048
    $region49: #{tpu_custom_call.1} parent=1 // pred_fallthru
      _
    // Predicated region
    $region50: #{tpu_custom_call.1} parent=1 // pred_check
      _
    $region51: #{tpu_custom_call.1} parent=1 // pred_check_branch
      %94 = sbr.rel (0) target = $region53
    $region52: #{tpu_custom_call.1} parent=1 // pred_region
      %95 = dma.done [#allocation9], 2048
    $region53: #{tpu_custom_call.1} parent=1 // pred_fallthru
      _
    // Predicated region
    $region54: #{tpu_custom_call.1} parent=1 // pred_check
      _
    $region55: #{tpu_custom_call.1} parent=1 // pred_check_branch
      %97 = sbr.rel (0) target = $region57
    $region56: #{tpu_custom_call.1} parent=1 // pred_region
      %98 = dma.done [#allocation9], 2048
    $region57: #{tpu_custom_call.1} parent=1 // pred_fallthru
      _
    %v99 = vld [vmem:[#allocation2] sm:$0xff]
    %v100 = vld [vmem:[#allocation5] sm:$0xff]
    %v101 = vld [vmem:[#allocation5 + $0x8] sm:$0xff]
    %v102 = vld [vmem:[#allocation5 + $0x10] sm:$0xff]
    %v103 = vld [vmem:[#allocation5 + $0x18] sm:$0xff]
    %v104 = vld [vmem:[#allocation5 + $0x20] sm:$0xff]
    %v105 = vld [vmem:[#allocation5 + $0x28] sm:$0xff]
    %v106 = vld [vmem:[#allocation5 + $0x30] sm:$0xff]
    %v107 = vld [vmem:[#allocation5 + $0x38] sm:$0xff]
    %v108 = vld [vmem:[#allocation5 + $0x40] sm:$0xff]
    %v109 = vld [vmem:[#allocation5 + $0x48] sm:$0xff]
    %v110 = vld [vmem:[#allocation5 + $0x50] sm:$0xff]
    %v111 = vld [vmem:[#allocation5 + $0x58] sm:$0xff]
    %v112 = vld [vmem:[#allocation5 + $0x60] sm:$0xff]
    %v113 = vld [vmem:[#allocation5 + $0x68] sm:$0xff]
    %v114 = vld [vmem:[#allocation5 + $0x70] sm:$0xff]
    %v115 = vld [vmem:[#allocation5 + $0x78] sm:$0xff]
    %v116 = vld [vmem:[%s2] sm:$0x1]
    %v118 = vlaneseq
    %v119 = vshrl.u32 %v118, 7
    %v120 = vsub.s32 0, %v119
    %v121 = vrot.slane %v116, %v120
    %123 = vmatprep.subr.mxu0 0.0
    %124 = vmatpush1.msra.mxu0 %v115
    %125 = vmatprep.subr.mxu0 0.0
    %126 = vmatpush1.msra.mxu0 %v114
    %127 = vmatprep.subr.mxu0 0.0
    %128 = vmatpush1.msra.mxu0 %v113
    %129 = vmatprep.subr.mxu0 0.0
    %130 = vmatpush1.msra.mxu0 %v112
    %131 = vmatprep.subr.mxu0 0.0
    %132 = vmatpush1.msra.mxu0 %v111
    %133 = vmatprep.subr.mxu0 0.0
    %134 = vmatpush1.msra.mxu0 %v110
    %135 = vmatprep.subr.mxu0 0.0
    %136 = vmatpush1.msra.mxu0 %v109
    %137 = vmatprep.subr.mxu0 0.0
    %138 = vmatpush1.msra.mxu0 %v108
    %139 = vmatprep.subr.mxu0 0.0
    %140 = vmatpush1.msra.mxu0 %v107
    %141 = vmatprep.subr.mxu0 0.0
    %142 = vmatpush1.msra.mxu0 %v106
    %143 = vmatprep.subr.mxu0 0.0
    %144 = vmatpush1.msra.mxu0 %v105
    %145 = vmatprep.subr.mxu0 0.0
    %146 = vmatpush1.msra.mxu0 %v104
    %147 = vmatprep.subr.mxu0 0.0
    %148 = vmatpush1.msra.mxu0 %v103
    %149 = vmatprep.subr.mxu0 0.0
    %150 = vmatpush1.msra.mxu0 %v102
    %151 = vmatprep.subr.mxu0 0.0
    %152 = vmatpush1.msra.mxu0 %v101
    %153 = vmatprep.subr.mxu0 0.0
    %154 = vmatpush1.msra.mxu0 %v100
    %155 = vmatprep.subr.mxu0 0.0
    %156 = vmatpush2.msra.mxu0 0.0
    %157 = vmatprep.subr.mxu0 0.0
    %158 = vmatpush2.msra.mxu0 0.0
    %159 = vmatprep.subr.mxu0 0.0
    %160 = vmatpush2.msra.mxu0 0.0
    %161 = vmatprep.subr.mxu0 0.0
    %162 = vmatpush2.msra.mxu0 0.0
    %163 = vmatprep.subr.mxu0 0.0
    %164 = vmatpush2.msra.mxu0 0.0
    %165 = vmatprep.subr.mxu0 0.0
    %166 = vmatpush2.msra.mxu0 0.0
    %167 = vmatprep.subr.mxu0 0.0
    %168 = vmatpush2.msra.mxu0 0.0
    %169 = vmatprep.subr.mxu0 0.0
    %170 = vmatpush2.msra.mxu0 0.0
    %171 = vmatprep.subr.mxu0 0.0
    %172 = vmatpush2.msra.mxu0 0.0
    %173 = vmatprep.subr.mxu0 0.0
    %174 = vmatpush2.msra.mxu0 0.0
    %175 = vmatprep.subr.mxu0 0.0
    %176 = vmatpush2.msra.mxu0 0.0
    %177 = vmatprep.subr.mxu0 0.0
    %178 = vmatpush2.msra.mxu0 0.0
    %179 = vmatprep.subr.mxu0 0.0
    %180 = vmatpush2.msra.mxu0 0.0
    %181 = vmatprep.subr.mxu0 0.0
    %182 = vmatpush2.msra.mxu0 0.0
    %183 = vmatprep.subr.mxu0 0.0
    %184 = vmatpush2.msra.mxu0 0.0
    %185 = vmatprep.subr.mxu0 0.0
    %186 = vmatpush2.msra.mxu0 0.0
    %187 = vmatprep.mubr.f32.mxu0 0.0
    %188 = vmatmul.mubr.f32.gmra.mxu0 %v99
    %v189 = vpop.f32.mrf.mxu0
    %v190 = vadd.f32 %v121, %v189
    %v191 = vpop.f32.mrf.mxu0
    %192 = vdwg.mxu0
    %v193 = vmax.f32 %v190, 0.0
    %v194 = vld [vmem:[#allocation7] sm:$0xff]
    %v195 = vld [vmem:[#allocation7 + $0x8] sm:$0xff]
    %v196 = vld [vmem:[#allocation7 + $0x10] sm:$0xff]
    %v197 = vld [vmem:[#allocation7 + $0x18] sm:$0xff]
    %v198 = vld [vmem:[#allocation7 + $0x20] sm:$0xff]
    %v199 = vld [vmem:[#allocation7 + $0x28] sm:$0xff]
    %v200 = vld [vmem:[#allocation7 + $0x30] sm:$0xff]
    %v201 = vld [vmem:[#allocation7 + $0x38] sm:$0xff]
    %v202 = vld [vmem:[#allocation7 + $0x40] sm:$0xff]
    %v203 = vld [vmem:[#allocation7 + $0x48] sm:$0xff]
    %v204 = vld [vmem:[#allocation7 + $0x50] sm:$0xff]
    %v205 = vld [vmem:[#allocation7 + $0x58] sm:$0xff]
    %v206 = vld [vmem:[#allocation7 + $0x60] sm:$0xff]
    %v207 = vld [vmem:[#allocation7 + $0x68] sm:$0xff]
    %v208 = vld [vmem:[#allocation7 + $0x70] sm:$0xff]
    %v209 = vld [vmem:[#allocation7 + $0x78] sm:$0xff]
    %v210 = vld [vmem:[%s4] sm:$0x1]
    %v212 = vlaneseq
    %v213 = vshrl.u32 %v212, 7
    %v214 = vsub.s32 0, %v213
    %v215 = vrot.slane %v210, %v214
    %217 = vmatprep.subr.mxu0 0.0
    %218 = vmatpush1.msra.mxu0 %v209
    %219 = vmatprep.subr.mxu0 0.0
    %220 = vmatpush1.msra.mxu0 %v208
    %221 = vmatprep.subr.mxu0 0.0
    %222 = vmatpush1.msra.mxu0 %v207
    %223 = vmatprep.subr.mxu0 0.0
    %224 = vmatpush1.msra.mxu0 %v206
    %225 = vmatprep.subr.mxu0 0.0
    %226 = vmatpush1.msra.mxu0 %v205
    %227 = vmatprep.subr.mxu0 0.0
    %228 = vmatpush1.msra.mxu0 %v204
    %229 = vmatprep.subr.mxu0 0.0
    %230 = vmatpush1.msra.mxu0 %v203
    %231 = vmatprep.subr.mxu0 0.0
    %232 = vmatpush1.msra.mxu0 %v202
    %233 = vmatprep.subr.mxu0 0.0
    %234 = vmatpush1.msra.mxu0 %v201
    %235 = vmatprep.subr.mxu0 0.0
    %236 = vmatpush1.msra.mxu0 %v200
    %237 = vmatprep.subr.mxu0 0.0
    %238 = vmatpush1.msra.mxu0 %v199
    %239 = vmatprep.subr.mxu0 0.0
    %240 = vmatpush1.msra.mxu0 %v198
    %241 = vmatprep.subr.mxu0 0.0
    %242 = vmatpush1.msra.mxu0 %v197
    %243 = vmatprep.subr.mxu0 0.0
    %244 = vmatpush1.msra.mxu0 %v196
    %245 = vmatprep.subr.mxu0 0.0
    %246 = vmatpush1.msra.mxu0 %v195
    %247 = vmatprep.subr.mxu0 0.0
    %248 = vmatpush1.msra.mxu0 %v194
    %249 = vmatprep.subr.mxu0 0.0
    %250 = vmatpush2.msra.mxu0 0.0
    %251 = vmatprep.subr.mxu0 0.0
    %252 = vmatpush2.msra.mxu0 0.0
    %253 = vmatprep.subr.mxu0 0.0
    %254 = vmatpush2.msra.mxu0 0.0
    %255 = vmatprep.subr.mxu0 0.0
    %256 = vmatpush2.msra.mxu0 0.0
    %257 = vmatprep.subr.mxu0 0.0
    %258 = vmatpush2.msra.mxu0 0.0
    %259 = vmatprep.subr.mxu0 0.0
    %260 = vmatpush2.msra.mxu0 0.0
    %261 = vmatprep.subr.mxu0 0.0
    %262 = vmatpush2.msra.mxu0 0.0
    %263 = vmatprep.subr.mxu0 0.0
    %264 = vmatpush2.msra.mxu0 0.0
    %265 = vmatprep.subr.mxu0 0.0
    %266 = vmatpush2.msra.mxu0 0.0
    %267 = vmatprep.subr.mxu0 0.0
    %268 = vmatpush2.msra.mxu0 0.0
    %269 = vmatprep.subr.mxu0 0.0
    %270 = vmatpush2.msra.mxu0 0.0
    %271 = vmatprep.subr.mxu0 0.0
    %272 = vmatpush2.msra.mxu0 0.0
    %273 = vmatprep.subr.mxu0 0.0
    %274 = vmatpush2.msra.mxu0 0.0
    %275 = vmatprep.subr.mxu0 0.0
    %276 = vmatpush2.msra.mxu0 0.0
    %277 = vmatprep.subr.mxu0 0.0
    %278 = vmatpush2.msra.mxu0 0.0
    %279 = vmatprep.subr.mxu0 0.0
    %280 = vmatpush2.msra.mxu0 0.0
    %281 = vmatprep.mubr.f32.mxu0 0.0
    %282 = vmatmul.mubr.f32.gmra.mxu0 %v193
    %v283 = vpop.f32.mrf.mxu0
    %v284 = vadd.f32 %v215, %v283
    %v285 = vpop.f32.mrf.mxu0
    %286 = vdwg.mxu0
    %v287 = vld [vmem:[#allocation8] sm:$0xff]
    %v288 = vld [vmem:[#allocation8 + $0x8] sm:$0xff]
    %v289 = vld [vmem:[#allocation8 + $0x10] sm:$0xff]
    %v290 = vld [vmem:[#allocation8 + $0x18] sm:$0xff]
    %v291 = vld [vmem:[#allocation8 + $0x20] sm:$0xff]
    %v292 = vld [vmem:[#allocation8 + $0x28] sm:$0xff]
    %v293 = vld [vmem:[#allocation8 + $0x30] sm:$0xff]
    %v294 = vld [vmem:[#allocation8 + $0x38] sm:$0xff]
    %v295 = vld [vmem:[#allocation8 + $0x40] sm:$0xff]
    %v296 = vld [vmem:[#allocation8 + $0x48] sm:$0xff]
    %v297 = vld [vmem:[#allocation8 + $0x50] sm:$0xff]
    %v298 = vld [vmem:[#allocation8 + $0x58] sm:$0xff]
    %v299 = vld [vmem:[#allocation8 + $0x60] sm:$0xff]
    %v300 = vld [vmem:[#allocation8 + $0x68] sm:$0xff]
    %v301 = vld [vmem:[#allocation8 + $0x70] sm:$0xff]
    %v302 = vld [vmem:[#allocation8 + $0x78] sm:$0xff]
    %v303 = vld [vmem:[%s6] sm:$0x1]
    %v305 = vlaneseq
    %v306 = vshrl.u32 %v305, 7
    %v307 = vsub.s32 0, %v306
    %v308 = vrot.slane %v303, %v307
    %310 = vmatprep.subr.mxu0 0.0
    %311 = vmatpush1.msra.mxu0 %v302
    %312 = vmatprep.subr.mxu0 0.0
    %313 = vmatpush1.msra.mxu0 %v301
    %314 = vmatprep.subr.mxu0 0.0
    %315 = vmatpush1.msra.mxu0 %v300
    %316 = vmatprep.subr.mxu0 0.0
    %317 = vmatpush1.msra.mxu0 %v299
    %318 = vmatprep.subr.mxu0 0.0
    %319 = vmatpush1.msra.mxu0 %v298
    %320 = vmatprep.subr.mxu0 0.0
    %321 = vmatpush1.msra.mxu0 %v297
    %322 = vmatprep.subr.mxu0 0.0
    %323 = vmatpush1.msra.mxu0 %v296
    %324 = vmatprep.subr.mxu0 0.0
    %325 = vmatpush1.msra.mxu0 %v295
    %326 = vmatprep.subr.mxu0 0.0
    %327 = vmatpush1.msra.mxu0 %v294
    %328 = vmatprep.subr.mxu0 0.0
    %329 = vmatpush1.msra.mxu0 %v293
    %330 = vmatprep.subr.mxu0 0.0
    %331 = vmatpush1.msra.mxu0 %v292
    %332 = vmatprep.subr.mxu0 0.0
    %333 = vmatpush1.msra.mxu0 %v291
    %334 = vmatprep.subr.mxu0 0.0
    %335 = vmatpush1.msra.mxu0 %v290
    %336 = vmatprep.subr.mxu0 0.0
    %337 = vmatpush1.msra.mxu0 %v289
    %338 = vmatprep.subr.mxu0 0.0
    %339 = vmatpush1.msra.mxu0 %v288
    %340 = vmatprep.subr.mxu0 0.0
    %341 = vmatpush1.msra.mxu0 %v287
    %342 = vmatprep.subr.mxu0 0.0
    %343 = vmatpush2.msra.mxu0 0.0
    %344 = vmatprep.subr.mxu0 0.0
    %345 = vmatpush2.msra.mxu0 0.0
    %346 = vmatprep.subr.mxu0 0.0
    %347 = vmatpush2.msra.mxu0 0.0
    %348 = vmatprep.subr.mxu0 0.0
    %349 = vmatpush2.msra.mxu0 0.0
    %350 = vmatprep.subr.mxu0 0.0
    %351 = vmatpush2.msra.mxu0 0.0
    %352 = vmatprep.subr.mxu0 0.0
    %353 = vmatpush2.msra.mxu0 0.0
    %354 = vmatprep.subr.mxu0 0.0
    %355 = vmatpush2.msra.mxu0 0.0
    %356 = vmatprep.subr.mxu0 0.0
    %357 = vmatpush2.msra.mxu0 0.0
    %358 = vmatprep.subr.mxu0 0.0
    %359 = vmatpush2.msra.mxu0 0.0
    %360 = vmatprep.subr.mxu0 0.0
    %361 = vmatpush2.msra.mxu0 0.0
    %362 = vmatprep.subr.mxu0 0.0
    %363 = vmatpush2.msra.mxu0 0.0
    %364 = vmatprep.subr.mxu0 0.0
    %365 = vmatpush2.msra.mxu0 0.0
    %366 = vmatprep.subr.mxu0 0.0
    %367 = vmatpush2.msra.mxu0 0.0
    %368 = vmatprep.subr.mxu0 0.0
    %369 = vmatpush2.msra.mxu0 0.0
    %370 = vmatprep.subr.mxu0 0.0
    %371 = vmatpush2.msra.mxu0 0.0
    %372 = vmatprep.subr.mxu0 0.0
    %373 = vmatpush2.msra.mxu0 0.0
    %374 = vmatprep.mubr.f32.mxu0 0.0
    %375 = vmatmul.mubr.f32.gmra.mxu0 %v284
    %v376 = vpop.f32.mrf.mxu0
    %v377 = vadd.f32 %v308, %v376
    %v378 = vpop.f32.mrf.mxu0
    %379 = vdwg.mxu0
    %v380 = vmax.f32 %v377, 0.0
    %v381 = vld [vmem:[#allocation10] sm:$0xff]
    %v382 = vld [vmem:[#allocation10 + $0x8] sm:$0xff]
    %v383 = vld [vmem:[#allocation10 + $0x10] sm:$0xff]
    %v384 = vld [vmem:[#allocation10 + $0x18] sm:$0xff]
    %v385 = vld [vmem:[#allocation10 + $0x20] sm:$0xff]
    %v386 = vld [vmem:[#allocation10 + $0x28] sm:$0xff]
    %v387 = vld [vmem:[#allocation10 + $0x30] sm:$0xff]
    %v388 = vld [vmem:[#allocation10 + $0x38] sm:$0xff]
    %v389 = vld [vmem:[#allocation10 + $0x40] sm:$0xff]
    %v390 = vld [vmem:[#allocation10 + $0x48] sm:$0xff]
    %v391 = vld [vmem:[#allocation10 + $0x50] sm:$0xff]
    %v392 = vld [vmem:[#allocation10 + $0x58] sm:$0xff]
    %v393 = vld [vmem:[#allocation10 + $0x60] sm:$0xff]
    %v394 = vld [vmem:[#allocation10 + $0x68] sm:$0xff]
    %v395 = vld [vmem:[#allocation10 + $0x70] sm:$0xff]
    %v396 = vld [vmem:[#allocation10 + $0x78] sm:$0xff]
    %v397 = vld [vmem:[%s8] sm:$0x1]
    %v399 = vlaneseq
    %v400 = vshrl.u32 %v399, 7
    %v401 = vsub.s32 0, %v400
    %v402 = vrot.slane %v397, %v401
    %404 = vmatprep.subr.mxu0 0.0
    %405 = vmatpush1.msra.mxu0 %v396
    %406 = vmatprep.subr.mxu0 0.0
    %407 = vmatpush1.msra.mxu0 %v395
    %408 = vmatprep.subr.mxu0 0.0
    %409 = vmatpush1.msra.mxu0 %v394
    %410 = vmatprep.subr.mxu0 0.0
    %411 = vmatpush1.msra.mxu0 %v393
    %412 = vmatprep.subr.mxu0 0.0
    %413 = vmatpush1.msra.mxu0 %v392
    %414 = vmatprep.subr.mxu0 0.0
    %415 = vmatpush1.msra.mxu0 %v391
    %416 = vmatprep.subr.mxu0 0.0
    %417 = vmatpush1.msra.mxu0 %v390
    %418 = vmatprep.subr.mxu0 0.0
    %419 = vmatpush1.msra.mxu0 %v389
    %420 = vmatprep.subr.mxu0 0.0
    %421 = vmatpush1.msra.mxu0 %v388
    %422 = vmatprep.subr.mxu0 0.0
    %423 = vmatpush1.msra.mxu0 %v387
    %424 = vmatprep.subr.mxu0 0.0
    %425 = vmatpush1.msra.mxu0 %v386
    %426 = vmatprep.subr.mxu0 0.0
    %427 = vmatpush1.msra.mxu0 %v385
    %428 = vmatprep.subr.mxu0 0.0
    %429 = vmatpush1.msra.mxu0 %v384
    %430 = vmatprep.subr.mxu0 0.0
    %431 = vmatpush1.msra.mxu0 %v383
    %432 = vmatprep.subr.mxu0 0.0
    %433 = vmatpush1.msra.mxu0 %v382
    %434 = vmatprep.subr.mxu0 0.0
    %435 = vmatpush1.msra.mxu0 %v381
    %436 = vmatprep.subr.mxu0 0.0
    %437 = vmatpush2.msra.mxu0 0.0
    %438 = vmatprep.subr.mxu0 0.0
    %439 = vmatpush2.msra.mxu0 0.0
    %440 = vmatprep.subr.mxu0 0.0
    %441 = vmatpush2.msra.mxu0 0.0
    %442 = vmatprep.subr.mxu0 0.0
    %443 = vmatpush2.msra.mxu0 0.0
    %444 = vmatprep.subr.mxu0 0.0
    %445 = vmatpush2.msra.mxu0 0.0
    %446 = vmatprep.subr.mxu0 0.0
    %447 = vmatpush2.msra.mxu0 0.0
    %448 = vmatprep.subr.mxu0 0.0
    %449 = vmatpush2.msra.mxu0 0.0
    %450 = vmatprep.subr.mxu0 0.0
    %451 = vmatpush2.msra.mxu0 0.0
    %452 = vmatprep.subr.mxu0 0.0
    %453 = vmatpush2.msra.mxu0 0.0
    %454 = vmatprep.subr.mxu0 0.0
    %455 = vmatpush2.msra.mxu0 0.0
    %456 = vmatprep.subr.mxu0 0.0
    %457 = vmatpush2.msra.mxu0 0.0
    %458 = vmatprep.subr.mxu0 0.0
    %459 = vmatpush2.msra.mxu0 0.0
    %460 = vmatprep.subr.mxu0 0.0
    %461 = vmatpush2.msra.mxu0 0.0
    %462 = vmatprep.subr.mxu0 0.0
    %463 = vmatpush2.msra.mxu0 0.0
    %464 = vmatprep.subr.mxu0 0.0
    %465 = vmatpush2.msra.mxu0 0.0
    %466 = vmatprep.subr.mxu0 0.0
    %467 = vmatpush2.msra.mxu0 0.0
    %468 = vmatprep.mubr.f32.mxu0 0.0
    %469 = vmatmul.mubr.f32.gmra.mxu0 %v380
    %v470 = vpop.f32.mrf.mxu0
    %v471 = vadd.f32 %v402, %v470
    %v472 = vpop.f32.mrf.mxu0
    %473 = vdwg.mxu0
    %v474 = vtanh.pop %v471
    %475 = vst [vmem:[#allocation11] sm:$0xff] %v474
    // Predicated region
    $region58: #{tpu_custom_call.1} parent=1 // pred_check
      _
    $region59: #{tpu_custom_call.1} parent=1 // pred_check_branch
      %477 = sbr.rel (0) target = $region61
    $region60: #{tpu_custom_call.1} parent=1 // pred_region
      %s479 = ssub.s32 128, 128
      %480 = vsyncadd [#allocation4], %s479
      %s482 = sshll.u32 [#allocation11], 4
      %s483 = int_to_ptr.vmem [resolvable:$true] %s482
      %485 = dma.vmem_to_hbm [thread:$0]  %s483, 128, %s9, [#allocation4]
    $region61: #{tpu_custom_call.1} parent=1 // pred_fallthru
      _
    // Predicated region
    $region62: #{tpu_custom_call.1} parent=1 // pred_check
      _
    $region63: #{tpu_custom_call.1} parent=1 // pred_check_branch
      %487 = sbr.rel (0) target = $region65
    $region64: #{tpu_custom_call.1} parent=1 // pred_region
      %488 = dma.done [#allocation4], 128
    $region65: #{tpu_custom_call.1} parent=1 // pred_fallthru
      _
    %489 = vsyncpa [#allocation3], 1
    %490 = vsyncpa [#allocation6], 1
    %491 = vsyncpa [#allocation9], 1
    %492 = vsyncpa [#allocation4], 1

</llo_original>
